<compile_context>
chip_gen: v7x
topology: tpu7x:2x2x1
jax: 0.10.0
libtpu: 0.0.40
codegen_flags: <defaults>
</compile_context>

<pallas_src>
import functools

import jax
import jax.numpy as jnp
from jax.experimental import pallas as pl
from jax.experimental.pallas import tpu as pltpu


def _triplet_losses_kernel(*refs, d, margin, split, lane_major):
    """Computes per-triplet losses for one tile of triplets.

    Inputs are either (a_ref, p_ref, n_ref) lane-aligned (tile_t, d) tiles
    (split=True) or a single packed (tile_t, 3*d) tile (split=False).
    Output block is (1, tile_t) when lane_major else (tile_t, 1).
    """
    in_refs, o_ref = refs[:-1], refs[-1]

    if split:
        a = in_refs[0][...]
        p = in_refs[1][...]
        n = in_refs[2][...]
    else:
        x_ref = in_refs[0]
        a = x_ref[:, 0:d]
        p = x_ref[:, d:2 * d]
        n = x_ref[:, 2 * d:3 * d]

    # Upcast once right after load (v5e has no bf16 VALU; matches f32 reference).
    a = a.astype(jnp.float32)
    p = p.astype(jnp.float32)
    n = n.astype(jnp.float32)

    dap = a - p
    dan = a - n
    # torch.cdist(p=2) semantics: sqrt of sum of squared differences (no eps).
    pos = jnp.sqrt(jnp.sum(dap * dap, axis=-1, keepdims=True))  # (tile_t, 1)
    neg = jnp.sqrt(jnp.sum(dan * dan, axis=-1, keepdims=True))  # (tile_t, 1)

    if margin is None:
        # SoftTripletLoss: log1p(exp(z)) computed as a numerically stable softplus.
        z = pos - neg
        loss = jnp.maximum(z, 0.0) + jnp.log1p(jnp.exp(-jnp.abs(z)))
    else:
        loss = jnp.maximum(margin + pos - neg, 0.0)

    if lane_major:
        # One small XLU transpose per tile -> unmasked lane-dense stores.
        o_ref[...] = jnp.transpose(loss, (1, 0)).astype(o_ref.dtype)
    else:
        o_ref[...] = loss.astype(o_ref.dtype)


def _choose_tile_t(t, row_bytes, step_budget_bytes=8 << 20):
    """Largest triplet-tile whose per-step input bytes stay within the budget.

    No row cap: for small D this yields many-thousand-row tiles so the
    ~0.35 us per-grid-step overhead is negligible versus the block DMA time.
    Multi-tile sizes are multiples of 128 (lane-dense output + alignment).
    """
    if t * row_bytes <= step_budget_bytes:
        return t
    tile = step_budget_bytes // max(row_bytes, 1)
    tile = max(128, (tile // 128) * 128)
    return min(tile, t)


def triplet_loss_plain(features, margin=1.0, reduction="mean", tile_t=None):
    """Pallas implementation of TripletLossPlain.forward.

    features: [N, D] with N % 3 == 0, rows stacked as a,p,n,a,p,n,...
    Returns a scalar (mean/sum) or a [N//3] vector (reduction='none').
    """
    assert reduction in ("mean", "sum", "none")
    n, d = features.shape
    assert n % 3 == 0
    t = n // 3

    # [3T, D] -> [T, 3*D]: anchor|positive|negative packed along the lane axis.
    packed = features.reshape(t, 3 * d)

    row_bytes = 3 * d * features.dtype.itemsize
    if tile_t is None:
        tile_t = _choose_tile_t(t, row_bytes)
    tile_t = int(min(tile_t, t))
    if tile_t < t:
        tile_t = max(8, (tile_t // 8) * 8)  # sublane-friendly for multi-tile grids
    num_tiles = int(pl.cdiv(t, tile_t))

    split = (d % 128 == 0)           # lane-tile-aligned a/p/n blocks possible
    lane_major = (tile_t % 128 == 0)  # legal lane-dense (1, tile_t) output blocks

    if split:
        # Three lane-dense (tile_t, d) streams out of the same packed array:
        # no in-kernel lane slicing at all.
        in_specs = [pl.BlockSpec((tile_t, d), (lambda i, _k=k: (i, _k)))
                    for k in range(3)]
        operands = (packed, packed, packed)
    else:
        in_specs = [pl.BlockSpec((tile_t, 3 * d), lambda i: (i, 0))]
        operands = (packed,)

    # Per-triplet losses in f32 for mean/sum (accurate wrapper reduction),
    # input dtype for reduction='none'.
    out_dtype = features.dtype if reduction == "none" else jnp.float32
    if lane_major:
        out_shape = jax.ShapeDtypeStruct((1, t), out_dtype)
        out_specs = pl.BlockSpec((1, tile_t), lambda i: (0, i))
    else:
        out_shape = jax.ShapeDtypeStruct((t, 1), out_dtype)
        out_specs = pl.BlockSpec((tile_t, 1), lambda i: (i, 0))

    # Account for double-buffered input blocks; keep within v7x headroom.
    step_bytes = tile_t * row_bytes
    vmem_limit = int(min(max(2 * step_bytes + (4 << 20), 32 << 20), 48 << 20))

    kernel = functools.partial(_triplet_losses_kernel, d=d, margin=margin,
                               split=split, lane_major=lane_major)
    losses = pl.pallas_call(
        kernel,
        out_shape=out_shape,
        grid=(num_tiles,),
        in_specs=in_specs,
        out_specs=out_specs,
        compiler_params=pltpu.CompilerParams(
            dimension_semantics=("parallel",),
            vmem_limit_bytes=vmem_limit),
    )(*operands)

    losses = losses.reshape(t)
    if reduction == "none":
        return losses
    # Finish the reduction in the wrapper: tiny (T floats) versus the input
    # stream, keeps the grid fully parallel (both v7x TensorCores usable).
    total = jnp.sum(losses)
    if reduction == "mean":
        total = total / t
    return total.astype(features.dtype)


def _reference(features, margin=1.0, reduction="mean"):
    """Pure-JAX reference mirroring the PyTorch module."""
    nrows, d = features.shape
    t = nrows // 3
    tri = features.reshape(t, 3, d)
    a, p, ng = tri[:, 0], tri[:, 1], tri[:, 2]
    pos = jnp.sqrt(jnp.sum((a - p) ** 2, axis=-1))
    neg = jnp.sqrt(jnp.sum((a - ng) ** 2, axis=-1))
    if margin is None:
        loss = jnp.log1p(jnp.exp(pos - neg))
    else:
        loss = jnp.maximum(margin + pos - neg, 0.0)
    if reduction == "mean":
        return loss.mean()
    if reduction == "sum":
        return loss.sum()
    return loss


if __name__ == "__main__":
    key = jax.random.PRNGKey(0)
    k1, k2, k3 = jax.random.split(key, 3)

    # Module-sized example: N=6 rows (2 triplets), feature dim 32.
    feats_small = jax.random.normal(k1, (6, 32), dtype=jnp.float32)

    out = triplet_loss_plain(feats_small, margin=1.0, reduction="mean")
    out = jax.block_until_ready(out)
    ref = _reference(feats_small, margin=1.0, reduction="mean")
    assert jnp.allclose(out, ref, atol=1e-5, rtol=1e-5), (out, ref)

    # Soft-margin (margin=None) + sum reduction.
    out_soft = triplet_loss_plain(feats_small, margin=None, reduction="sum")
    ref_soft = _reference(feats_small, margin=None, reduction="sum")
    assert jnp.allclose(out_soft, ref_soft, atol=1e-5, rtol=1e-5), (out_soft, ref_soft)

    # reduction='none'.
    out_none = triplet_loss_plain(feats_small, margin=1.0, reduction="none")
    ref_none = _reference(feats_small, margin=1.0, reduction="none")
    assert jnp.allclose(out_none, ref_none, atol=1e-5, rtol=1e-5)

    # Multi-tile, non-lane-aligned D, partial last tile (column-output fallback).
    feats_mid = jax.random.normal(k2, (450, 64), dtype=jnp.float32)   # T = 150
    out_mid = triplet_loss_plain(feats_mid, margin=1.0, reduction="mean", tile_t=64)
    ref_mid = _reference(feats_mid, margin=1.0, reduction="mean")
    assert jnp.allclose(out_mid, ref_mid, atol=1e-4, rtol=1e-4), (out_mid, ref_mid)
    out_mid_none = triplet_loss_plain(feats_mid, margin=1.0, reduction="none", tile_t=64)
    ref_mid_none = _reference(feats_mid, margin=1.0, reduction="none")
    assert jnp.allclose(out_mid_none, ref_mid_none, atol=1e-4, rtol=1e-4)

    # Multi-tile, lane-aligned D (split a/p/n streams + lane-dense output),
    # partial last tile on both the input and output blocks.
    feats_big = jax.random.normal(k3, (600, 128), dtype=jnp.float32)  # T = 200
    out_big = triplet_loss_plain(feats_big, margin=1.0, reduction="sum", tile_t=128)
    ref_big = _reference(feats_big, margin=1.0, reduction="sum")
    assert jnp.allclose(out_big, ref_big, atol=1e-3, rtol=1e-4), (out_big, ref_big)
    out_big_none = triplet_loss_plain(feats_big, margin=1.0, reduction="none", tile_t=128)
    ref_big_none = _reference(feats_big, margin=1.0, reduction="none")
    assert jnp.allclose(out_big_none, ref_big_none, atol=1e-4, rtol=1e-4)

    jax.block_until_ready((out, out_soft, out_none, out_mid, out_mid_none,
                           out_big, out_big_none))
    print("KERNEL_OK")
</pallas_src>

<mosaic_0001>
module attributes {stable_mosaic.version = 11 : i64} {
  func.func @_triplet_losses_kernel(%arg0: i32, %arg1: memref<2x96xf32, #tpu.memory_space<vmem>>, %arg2: memref<2x1xf32, #tpu.memory_space<vmem>>) attributes {dimension_semantics = [#tpu.dimension_semantics<parallel>], iteration_bounds = array<i64: 1>, scalar_prefetch = 0 : i64, scratch_operands = 0 : i64, tpu.core_type = #tpu.core_type<tc>, window_params = [{transform_indices = @transform_0, window_bounds = array<i64: 2, 96>}, {transform_indices = @transform_1, window_bounds = array<i64: 2, 1>}]} {
    %c0 = arith.constant 0 : index
    %c0_0 = arith.constant 0 : index
    %0 = vector.load %arg1[%c0, %c0_0] : memref<2x96xf32, #tpu.memory_space<vmem>>, vector<2x32xf32>
    %c0_1 = arith.constant 0 : index
    %c32 = arith.constant 32 : index
    %1 = vector.load %arg1[%c0_1, %c32] : memref<2x96xf32, #tpu.memory_space<vmem>>, vector<2x32xf32>
    %c0_2 = arith.constant 0 : index
    %c64 = arith.constant 64 : index
    %2 = vector.load %arg1[%c0_2, %c64] : memref<2x96xf32, #tpu.memory_space<vmem>>, vector<2x32xf32>
    %3 = arith.subf %0, %1 : vector<2x32xf32>
    %4 = arith.subf %0, %2 : vector<2x32xf32>
    %5 = arith.mulf %3, %3 : vector<2x32xf32>
    %cst = arith.constant dense<0.000000e+00> : vector<2xf32>
    %6 = vector.multi_reduction <add>, %5, %cst [1] : vector<2x32xf32> to vector<2xf32>
    %7 = vector.shape_cast %6 : vector<2xf32> to vector<2x1xf32>
    %8 = math.sqrt %7 : vector<2x1xf32>
    %9 = arith.mulf %4, %4 : vector<2x32xf32>
    %cst_3 = arith.constant dense<0.000000e+00> : vector<2xf32>
    %10 = vector.multi_reduction <add>, %9, %cst_3 [1] : vector<2x32xf32> to vector<2xf32>
    %11 = vector.shape_cast %10 : vector<2xf32> to vector<2x1xf32>
    %12 = math.sqrt %11 : vector<2x1xf32>
    %cst_4 = arith.constant 1.000000e+00 : f32
    %13 = vector.broadcast %cst_4 : f32 to vector<2x1xf32>
    %14 = arith.addf %13, %8 : vector<2x1xf32>
    %15 = arith.subf %14, %12 : vector<2x1xf32>
    %cst_5 = arith.constant 0.000000e+00 : f32
    %16 = vector.broadcast %cst_5 : f32 to vector<2x1xf32>
    %17 = arith.maximumf %15, %16 : vector<2x1xf32>
    %c0_6 = arith.constant 0 : index
    %c0_7 = arith.constant 0 : index
    %18 = vector.load %arg2[%c0_6, %c0_7] : memref<2x1xf32, #tpu.memory_space<vmem>>, vector<2x1xf32>
    tpu.vector_store %arg2[%c0_6, %c0_7], %17 {strides = array<i32>} : memref<2x1xf32, #tpu.memory_space<vmem>>, vector<2x1xf32>,
    return
  }
  func.func @transform_0(%arg0: i32) -> (i32, i32) {
    %c0_i32 = arith.constant 0 : i32
    %c0_i32_0 = arith.constant 0 : i32
    return %arg0, %c0_i32 : i32, i32
  }
  func.func @transform_1(%arg0: i32) -> (i32, i32) {
    %c0_i32 = arith.constant 0 : i32
    %c0_i32_0 = arith.constant 0 : i32
    return %arg0, %c0_i32 : i32, i32
  }
}

</mosaic_0001>

<llo_original>
// kernel: tpu_custom_call.1
$region0: #{tpu_custom_call.1}
  #allocation0 [shape = 'u32[]', space=smem, size = 0x4, offset = 0x4, fixed_abs, tag = 'smem constant byte address 0x4 - core index']
  #allocation1 [shape = 'u32[144,128]{1,0:T(1,128)}', space=vmem, size = 0x12000, scoped, tag = 'internal scratch']
  %s0 = inlined_call_operand.hbm [shape: f32[2,96], index: 0, kind: input, shape index: {}]
  %s1 = inlined_call_operand.vmem [shape: f32[2,1], index: 1, kind: output, shape index: {}]
  %s2 = sld [smem:[#allocation0]]
  $region18: #{tpu_custom_call.1} parent=0
    _
  %s4 = ssub.s32 1, %s2
  %s5 = scalar_select 0, %s4, %s2
  $region1: #{tpu_custom_call.1} parent=0
    #allocation2 [shape = 'u8[1024]{0}', space=vmem, size = 0x400, scoped, tag = 'input window, operand 0, single buffered']
    #allocation3 [shape = 's32[1]{0}', space=sflag, size = 0x4, scoped, tag = 'scoped memory for tpu_custom_call.1']
    %6 = vsyncpa [#allocation3], 0
    // Predicated region
    $region2: #{tpu_custom_call.1} parent=1 // pred_check
      _
    $region3: #{tpu_custom_call.1} parent=1 // pred_check_branch
      %8 = sbr.rel (0) target = $region5
    $region4: #{tpu_custom_call.1} parent=1 // pred_region
      %s10 = ssub.s32 32, 32
      %11 = vsyncadd [#allocation3], %s10
      %s13 = sshll.u32 [#allocation2], 4
      %s14 = int_to_ptr.vmem [resolvable:$true] %s13
      %16 = dma.hbm_to_vmem [thread:$0]  %s0, 32, %s14, [#allocation3]
    $region5: #{tpu_custom_call.1} parent=1 // pred_fallthru
      _
    // Predicated region
    $region6: #{tpu_custom_call.1} parent=1 // pred_check
      _
    $region7: #{tpu_custom_call.1} parent=1 // pred_check_branch
      %18 = sbr.rel (0) target = $region9
    $region8: #{tpu_custom_call.1} parent=1 // pred_region
      %19 = dma.done [#allocation3], 32
    $region9: #{tpu_custom_call.1} parent=1 // pred_fallthru
      _
    %v20 = vld [vmem:[#allocation2] sm:$0x3]
    %22 = vrot.lane.b32.xlu0 %v20, 96
    %v23 = vpop.permute.xlu0 %22
    %v25 = vsub.f32 %v20, %v23
    %26 = vrot.lane.b32.xlu0 %v20, 64
    %v27 = vpop.permute.xlu0 %26
    %v29 = vsub.f32 %v20, %v27
    %v30 = vmul.f32 %v25, %v25
    %vm31 = vcmask 254976
    %v32 = vsel %vm31, %v30, 0.0
    %33 = vadd.xlane.f32.xlu0 %v32
    %v34 = vpop.xlane.xlu0 %33
    %v35 = vrsqrt.pop %v34
    %v36 = vmul.f32 %v34, %v35
    %vm37 = vcmp.eq.f32.partialorder %v34, inf
    %v38 = vsel %vm37, %v34, %v36
    %vm39 = vcmp.eq.f32.partialorder %v34, 0.0
    %v40 = vand.u32 %v34, 2147483648
    %v41 = vsel %vm39, %v40, %v38
    %v42 = vmul.f32 %v29, %v29
    %v43 = vsel %vm31, %v42, 0.0
    %44 = vadd.xlane.f32.xlu0 %v43
    %v45 = vpop.xlane.xlu0 %44
    %v46 = vrsqrt.pop %v45
    %v47 = vmul.f32 %v45, %v46
    %vm48 = vcmp.eq.f32.partialorder %v45, inf
    %v49 = vsel %vm48, %v45, %v47
    %vm50 = vcmp.eq.f32.partialorder %v45, 0.0
    %v51 = vand.u32 %v45, 2147483648
    %v52 = vsel %vm50, %v51, %v49
    %v53 = vadd.f32 %v41, 1.0
    %v54 = vsub.f32 %v53, %v52
    %v55 = vmax.f32 %v54, 0.0
    %vm56 = vcmask 1024
    %57 = vst.msk [vmem:[%s1] sm:$0x3] %vm56, %v55
    // Predicated region
    $region10: #{tpu_custom_call.1} parent=1 // pred_check
      _
    $region11: #{tpu_custom_call.1} parent=1 // pred_check_branch
      %59 = sbr.rel (0) target = $region13
    $region12: #{tpu_custom_call.1} parent=1 // pred_region
      _
    $region13: #{tpu_custom_call.1} parent=1 // pred_fallthru
      _
    // Predicated region
    $region14: #{tpu_custom_call.1} parent=1 // pred_check
      _
    $region15: #{tpu_custom_call.1} parent=1 // pred_check_branch
      %61 = sbr.rel (0) target = $region17
    $region16: #{tpu_custom_call.1} parent=1 // pred_region
      _
    $region17: #{tpu_custom_call.1} parent=1 // pred_fallthru
      _
    %62 = vsyncpa [#allocation3], 1

</llo_original>
